<compile_context>
chip_gen: v6e
topology: v6e:2x2x1
jax: 0.10.0
libtpu: 0.0.40
codegen_flags: <defaults>
</compile_context>

<pallas_src>
import jax
import jax.numpy as jnp
from jax.experimental import pallas as pl
from jax.experimental.pallas import tpu as pltpu


def _round_up(x, m):
    return ((x + m - 1) // m) * m


def _gelu_f32(x):
    # Exact (erf-based) GELU in f32, matching transformers' ACT2FN['gelu'].
    return 0.5 * x * (1.0 + jax.lax.erf(x * (1.0 / jnp.sqrt(2.0).astype(x.dtype))))


def mlm_head_kernel(x_ref, w1_ref, b1_ref, w2_ref, b2_ref, w3_ref, o_ref, h_ref):
    # Grid = (row tiles, vocab tiles); vocab axis is innermost and "arbitrary".
    # The transform is only recomputed when the row tile changes (j == 0);
    # its result lives in the f32 VMEM scratch h_ref (tm, E).
    @pl.when(pl.program_id(1) == 0)
    def _():
        x = x_ref[...]                                                    # (tm, H)
        h = jnp.dot(x, w1_ref[...], preferred_element_type=jnp.float32)   # (tm, H) f32
        h = h + b1_ref[...].astype(jnp.float32)
        h = _gelu_f32(h)
        # hidden -> embedding, FakeLayerNorm affine already folded into w2/b2
        h = jnp.dot(h.astype(w2_ref.dtype), w2_ref[...],
                    preferred_element_type=jnp.float32)
        h_ref[...] = h + b2_ref[...].astype(jnp.float32)                  # (tm, E) f32

    # Per-vocab-tile work: only the decoder matmul (where >95% of the FLOPs are).
    out = jnp.dot(h_ref[...].astype(w3_ref.dtype), w3_ref[...],
                  preferred_element_type=jnp.float32)                     # (tm, tn) f32
    o_ref[...] = out.astype(o_ref.dtype)


def bert_only_mlm_head(sequence_output, params, *, tm=256, tn=1024):
    """sequence_output: [B, S, H] -> prediction_scores: [B, S, V]."""
    B, S, H = sequence_output.shape
    w1, b1 = params["dense_w"], params["dense_b"]
    ln_w, ln_b = params["ln_w"], params["ln_b"]
    w2, w3 = params["linear_w"], params["decoder_w"]
    E = w2.shape[1]
    V = w3.shape[1]
    M = B * S
    out_dtype = sequence_output.dtype

    # Constant-fold the FakeLayerNorm affine into the hidden->embedding linear.
    # (ln_w * h + ln_b) @ W2  ==  h @ (ln_w[:, None] * W2) + (ln_b @ W2)
    w2_fused = (ln_w.astype(jnp.float32)[:, None] * w2.astype(jnp.float32)).astype(w2.dtype)
    b2_fused = (ln_b.astype(jnp.float32) @ w2.astype(jnp.float32)).reshape(1, E).astype(w2.dtype)

    x2d = sequence_output.reshape(M, H)
    b1_2d = b1.reshape(1, H)

    # Clamp tiles for small problems while keeping (8, 128) alignment, then pad.
    tm = min(tm, _round_up(M, 8))
    tn = min(tn, _round_up(V, 128))
    Mp = _round_up(M, tm)
    Vp = _round_up(V, tn)
    if Mp != M:
        x2d = jnp.pad(x2d, ((0, Mp - M), (0, 0)))
    w3_p = jnp.pad(w3, ((0, 0), (0, Vp - V))) if Vp != V else w3

    grid = (Mp // tm, Vp // tn)

    # Rough VMEM budget (double-buffered inputs/outputs + scratch) to size the scoped limit.
    in_isz = jnp.dtype(w3.dtype).itemsize
    x_isz = jnp.dtype(x2d.dtype).itemsize
    o_isz = jnp.dtype(out_dtype).itemsize
    vmem_est = (
        2 * tm * H * x_isz
        + 2 * (H * H + H + H * E + E) * in_isz
        + 2 * E * tn * in_isz
        + 2 * tm * tn * o_isz
        + tm * E * 4
    )
    vmem_limit = max(32 * 1024 * 1024, int(1.3 * vmem_est))

    cost = pl.CostEstimate(
        flops=2 * M * H * H + 2 * M * H * E + 2 * M * E * V,
        transcendentals=M * H,
        bytes_accessed=(
            M * H * x_isz
            + (H * H + H + H * E + E + E * V) * in_isz
            + M * V * o_isz
        ),
    )

    out2d = pl.pallas_call(
        mlm_head_kernel,
        out_shape=jax.ShapeDtypeStruct((Mp, Vp), out_dtype),
        grid_spec=pltpu.PrefetchScalarGridSpec(
            num_scalar_prefetch=0,
            grid=grid,
            in_specs=[
                pl.BlockSpec((tm, H), lambda i, j: (i, 0)),   # x rows (constant over j)
                pl.BlockSpec((H, H), lambda i, j: (0, 0)),    # dense weight [in, out], resident
                pl.BlockSpec((1, H), lambda i, j: (0, 0)),    # dense bias
                pl.BlockSpec((H, E), lambda i, j: (0, 0)),    # fused linear weight [in, out]
                pl.BlockSpec((1, E), lambda i, j: (0, 0)),    # fused linear bias (from ln_b)
                pl.BlockSpec((E, tn), lambda i, j: (0, j)),   # decoder weight, streamed over V
            ],
            out_specs=pl.BlockSpec((tm, tn), lambda i, j: (i, j)),
            scratch_shapes=[pltpu.VMEM((tm, E), jnp.float32)],  # cached transform output
        ),
        compiler_params=pltpu.CompilerParams(
            dimension_semantics=("parallel", "arbitrary"),
            vmem_limit_bytes=vmem_limit,
        ),
        cost_estimate=cost,
    )(x2d, w1, b1_2d, w2_fused, b2_fused, w3_p)

    return out2d[:M, :V].reshape(B, S, V)


def init_params(key, hidden_size, embedding_size, vocab_size, dtype=jnp.float32):
    k1, k2, k3 = jax.random.split(key, 3)
    scale = 0.02
    return {
        # stored as [in, out] (transpose of torch.nn.Linear weight)
        "dense_w": (scale * jax.random.normal(k1, (hidden_size, hidden_size))).astype(dtype),
        "dense_b": jnp.zeros((hidden_size,), dtype),
        "ln_w": jnp.ones((hidden_size,), dtype),      # FakeBertLayerNorm init: ones
        "ln_b": jnp.zeros((hidden_size,), dtype),     # FakeBertLayerNorm init: zeros
        "linear_w": (scale * jax.random.normal(k2, (hidden_size, embedding_size))).astype(dtype),
        "decoder_w": (scale * jax.random.normal(k3, (embedding_size, vocab_size))).astype(dtype),
    }


def reference_forward(x, p):
    # Pure-JAX reference with the original (un-fused) PyTorch semantics.
    h = x @ p["dense_w"] + p["dense_b"]
    h = 0.5 * h * (1.0 + jax.lax.erf(h / jnp.sqrt(2.0)))
    h = p["ln_w"] * h + p["ln_b"]
    h = h @ p["linear_w"]
    return h @ p["decoder_w"]


if __name__ == "__main__":
    # Small config consistent with the module: hidden_size=32, embedding_size=16, vocab_size=64.
    B, S, H, E, V = 2, 8, 32, 16, 64
    key = jax.random.PRNGKey(0)
    k_x, k_p = jax.random.split(key)

    params = init_params(k_p, H, E, V)
    sequence_output = jax.random.normal(k_x, (B, S, H), dtype=jnp.float32)

    scores = bert_only_mlm_head(sequence_output, params)
    scores = jax.block_until_ready(scores)

    ref = reference_forward(sequence_output, params)
    assert scores.shape == (B, S, V)
    assert jnp.allclose(scores, ref, atol=1e-4, rtol=1e-4), "mismatch vs reference"

    print("KERNEL_OK")
</pallas_src>

<mosaic_0001>
module attributes {stable_mosaic.version = 11 : i64} {
  func.func @mlm_head_kernel(%arg0: i32, %arg1: i32, %arg2: memref<16x32xf32, #tpu.memory_space<vmem>>, %arg3: memref<32x32xf32, #tpu.memory_space<vmem>>, %arg4: memref<1x32xf32, #tpu.memory_space<vmem>>, %arg5: memref<32x16xf32, #tpu.memory_space<vmem>>, %arg6: memref<1x16xf32, #tpu.memory_space<vmem>>, %arg7: memref<16x128xf32, #tpu.memory_space<vmem>>, %arg8: memref<16x128xf32, #tpu.memory_space<vmem>>, %arg9: memref<16x16xf32, #tpu.memory_space<vmem>>) attributes {dimension_semantics = [#tpu.dimension_semantics<parallel>, #tpu.dimension_semantics<arbitrary>], iteration_bounds = array<i64: 1, 1>, scalar_prefetch = 0 : i64, scratch_operands = 1 : i64, tpu.core_type = #tpu.core_type<tc>, window_params = [{transform_indices = @transform_0, window_bounds = array<i64: 16, 32>}, {pipeline_mode = #tpu.pipeline_mode<synchronous>, transform_indices = @transform_1, window_bounds = array<i64: 32, 32>}, {pipeline_mode = #tpu.pipeline_mode<synchronous>, transform_indices = @transform_2, window_bounds = array<i64: 1, 32>}, {pipeline_mode = #tpu.pipeline_mode<synchronous>, transform_indices = @transform_3, window_bounds = array<i64: 32, 16>}, {pipeline_mode = #tpu.pipeline_mode<synchronous>, transform_indices = @transform_4, window_bounds = array<i64: 1, 16>}, {transform_indices = @transform_5, window_bounds = array<i64: 16, 128>}, {transform_indices = @transform_6, window_bounds = array<i64: 16, 128>}]} {
    %c0_i32 = arith.constant 0 : i32
    %0 = arith.cmpi eq, %arg1, %c0_i32 : i32
    %1 = arith.extui %0 : i1 to i32
    %c0_i32_0 = arith.constant 0 : i32
    %2 = arith.cmpi ne, %1, %c0_i32_0 : i32
    scf.if %2 {
      %c0_6 = arith.constant 0 : index
      %c0_7 = arith.constant 0 : index
      %7 = vector.load %arg2[%c0_6, %c0_7] : memref<16x32xf32, #tpu.memory_space<vmem>>, vector<16x32xf32>
      %c0_8 = arith.constant 0 : index
      %c0_9 = arith.constant 0 : index
      %8 = vector.load %arg3[%c0_8, %c0_9] : memref<32x32xf32, #tpu.memory_space<vmem>>, vector<32x32xf32>
      %cst_10 = arith.constant dense<0.000000e+00> : vector<16x32xf32>
      %9 = tpu.matmul %7, %8, %cst_10 {dimension_numbers = #tpu.dot_dimension_numbers<[1], [0], [0], [1], [0, 0, 1, 1], [], []>} : vector<16x32xf32>, vector<32x32xf32>, vector<16x32xf32> -> vector<16x32xf32>
      %c0_11 = arith.constant 0 : index
      %c0_12 = arith.constant 0 : index
      %10 = vector.load %arg4[%c0_11, %c0_12] : memref<1x32xf32, #tpu.memory_space<vmem>>, vector<1x32xf32>
      %11 = vector.broadcast %10 : vector<1x32xf32> to vector<16x32xf32>
      %12 = arith.addf %9, %11 : vector<16x32xf32>
      %cst_13 = arith.constant 5.000000e-01 : f32
      %13 = vector.broadcast %cst_13 : f32 to vector<16x32xf32>
      %14 = arith.mulf %13, %12 : vector<16x32xf32>
      %cst_14 = arith.constant 2.000000e+00 : f32
      %15 = math.sqrt %cst_14 : f32
      %cst_15 = arith.constant 1.000000e+00 : f32
      %16 = arith.divf %cst_15, %15 : f32
      %17 = vector.broadcast %16 : f32 to vector<16x32xf32>
      %18 = arith.mulf %12, %17 : vector<16x32xf32>
      %19 = math.erf %18 : vector<16x32xf32>
      %cst_16 = arith.constant 1.000000e+00 : f32
      %20 = vector.broadcast %cst_16 : f32 to vector<16x32xf32>
      %21 = arith.addf %20, %19 : vector<16x32xf32>
      %22 = arith.mulf %14, %21 : vector<16x32xf32>
      %c0_17 = arith.constant 0 : index
      %c0_18 = arith.constant 0 : index
      %23 = vector.load %arg5[%c0_17, %c0_18] : memref<32x16xf32, #tpu.memory_space<vmem>>, vector<32x16xf32>
      %cst_19 = arith.constant dense<0.000000e+00> : vector<16x16xf32>
      %24 = tpu.matmul %22, %23, %cst_19 {dimension_numbers = #tpu.dot_dimension_numbers<[1], [0], [0], [1], [0, 0, 1, 1], [], []>} : vector<16x32xf32>, vector<32x16xf32>, vector<16x16xf32> -> vector<16x16xf32>
      %c0_20 = arith.constant 0 : index
      %c0_21 = arith.constant 0 : index
      %25 = vector.load %arg6[%c0_20, %c0_21] : memref<1x16xf32, #tpu.memory_space<vmem>>, vector<1x16xf32>
      %26 = vector.broadcast %25 : vector<1x16xf32> to vector<16x16xf32>
      %27 = arith.addf %24, %26 : vector<16x16xf32>
      %c0_22 = arith.constant 0 : index
      %c0_23 = arith.constant 0 : index
      %28 = vector.load %arg9[%c0_22, %c0_23] : memref<16x16xf32, #tpu.memory_space<vmem>>, vector<16x16xf32>
      tpu.vector_store %arg9[%c0_22, %c0_23], %27 {strides = array<i32>} : memref<16x16xf32, #tpu.memory_space<vmem>>, vector<16x16xf32>,
    } else {
    }
    %c0 = arith.constant 0 : index
    %c0_1 = arith.constant 0 : index
    %3 = vector.load %arg9[%c0, %c0_1] : memref<16x16xf32, #tpu.memory_space<vmem>>, vector<16x16xf32>
    %c0_2 = arith.constant 0 : index
    %c0_3 = arith.constant 0 : index
    %4 = vector.load %arg7[%c0_2, %c0_3] : memref<16x128xf32, #tpu.memory_space<vmem>>, vector<16x128xf32>
    %cst = arith.constant dense<0.000000e+00> : vector<16x128xf32>
    %5 = tpu.matmul %3, %4, %cst {dimension_numbers = #tpu.dot_dimension_numbers<[1], [0], [0], [1], [0, 0, 1, 1], [], []>} : vector<16x16xf32>, vector<16x128xf32>, vector<16x128xf32> -> vector<16x128xf32>
    %c0_4 = arith.constant 0 : index
    %c0_5 = arith.constant 0 : index
    %6 = vector.load %arg8[%c0_4, %c0_5] : memref<16x128xf32, #tpu.memory_space<vmem>>, vector<16x128xf32>
    tpu.vector_store %arg8[%c0_4, %c0_5], %5 {strides = array<i32>} : memref<16x128xf32, #tpu.memory_space<vmem>>, vector<16x128xf32>,
    return
  }
  func.func @transform_0(%arg0: i32, %arg1: i32) -> (i32, i32) {
    %c0_i32 = arith.constant 0 : i32
    %c0_i32_0 = arith.constant 0 : i32
    return %arg0, %c0_i32 : i32, i32
  }
  func.func @transform_1(%arg0: i32, %arg1: i32) -> (i32, i32) {
    %c0_i32 = arith.constant 0 : i32
    %c0_i32_0 = arith.constant 0 : i32
    %c0_i32_1 = arith.constant 0 : i32
    return %c0_i32, %c0_i32_0 : i32, i32
  }
  func.func @transform_2(%arg0: i32, %arg1: i32) -> (i32, i32) {
    %c0_i32 = arith.constant 0 : i32
    %c0_i32_0 = arith.constant 0 : i32
    %c0_i32_1 = arith.constant 0 : i32
    return %c0_i32, %c0_i32_0 : i32, i32
  }
  func.func @transform_3(%arg0: i32, %arg1: i32) -> (i32, i32) {
    %c0_i32 = arith.constant 0 : i32
    %c0_i32_0 = arith.constant 0 : i32
    %c0_i32_1 = arith.constant 0 : i32
    return %c0_i32, %c0_i32_0 : i32, i32
  }
  func.func @transform_4(%arg0: i32, %arg1: i32) -> (i32, i32) {
    %c0_i32 = arith.constant 0 : i32
    %c0_i32_0 = arith.constant 0 : i32
    %c0_i32_1 = arith.constant 0 : i32
    return %c0_i32, %c0_i32_0 : i32, i32
  }
  func.func @transform_5(%arg0: i32, %arg1: i32) -> (i32, i32) {
    %c0_i32 = arith.constant 0 : i32
    %c0_i32_0 = arith.constant 0 : i32
    return %c0_i32, %arg1 : i32, i32
  }
  func.func @transform_6(%arg0: i32, %arg1: i32) -> (i32, i32) {
    %c0_i32 = arith.constant 0 : i32
    return %arg0, %arg1 : i32, i32
  }
}

</mosaic_0001>

<llo_original>
// kernel: tpu_custom_call.1
$region0: #{tpu_custom_call.1}
  #allocation0 [shape = 'u32[]', space=smem, size = 0x4, offset = 0x4, fixed_abs, tag = 'smem constant byte address 0x4 - core index']
  #allocation1 [shape = 'u32[144,128]{1,0:T(1,128)}', space=vmem, size = 0x12000, scoped, tag = 'internal scratch']
  #allocation2 [shape = 'f32[16,16]{1,0:T(8,128)}', space=vmem, size = 0x2000, scoped, tag = 'scratch operand']
  %s0 = inlined_call_operand.vmem [shape: f32[16,32], index: 0, kind: input, shape index: {}]
  %s1 = inlined_call_operand.vmem [shape: f32[32,32], index: 1, kind: input, shape index: {}]
  %s2 = inlined_call_operand.vmem [shape: f32[1,32], index: 2, kind: input, shape index: {}]
  %s3 = inlined_call_operand.vmem [shape: f32[32,16], index: 3, kind: input, shape index: {}]
  %s4 = inlined_call_operand.vmem [shape: f32[1,16], index: 4, kind: input, shape index: {}]
  %s5 = inlined_call_operand.hbm [shape: f32[16,128], index: 5, kind: input, shape index: {}]
  %s6 = inlined_call_operand.hbm [shape: f32[16,128], index: 6, kind: output, shape index: {}]
  %s7 = sld [smem:[#allocation0]]
  $region42: #{tpu_custom_call.1} parent=0
    _
  %s9 = ssub.s32 1, %s7
  %s10 = scalar_select 0, %s9, %s7
  $region1: #{tpu_custom_call.1} parent=0
    #allocation3 [shape = 'u8[8192]{0}', space=vmem, size = 0x2000, scoped, tag = 'input window, operand 5, single buffered']
    #allocation4 [shape = 's32[1]{0}', space=sflag, size = 0x4, scoped, tag = 'scoped memory for tpu_custom_call.1']
    #allocation5 [shape = 's32[1]{0}', space=sflag, size = 0x4, scoped, tag = 'scoped memory for tpu_custom_call.1']
    #allocation6 [shape = 'u8[8192]{0}', space=vmem, size = 0x2000, scoped, tag = 'output window, operand 0, single buffered']
    %11 = vsyncpa [#allocation4], 0
    %12 = vsyncpa [#allocation5], 0
    // Predicated region
    $region2: #{tpu_custom_call.1} parent=1 // pred_check
      _
    $region3: #{tpu_custom_call.1} parent=1 // pred_check_branch
      %14 = sbr.rel (0) target = $region5
    $region4: #{tpu_custom_call.1} parent=1 // pred_region
      _
    $region5: #{tpu_custom_call.1} parent=1 // pred_fallthru
      _
    // Predicated region
    $region6: #{tpu_custom_call.1} parent=1 // pred_check
      _
    $region7: #{tpu_custom_call.1} parent=1 // pred_check_branch
      %16 = sbr.rel (0) target = $region9
    $region8: #{tpu_custom_call.1} parent=1 // pred_region
      _
    $region9: #{tpu_custom_call.1} parent=1 // pred_fallthru
      _
    // Predicated region
    $region10: #{tpu_custom_call.1} parent=1 // pred_check
      _
    $region11: #{tpu_custom_call.1} parent=1 // pred_check_branch
      %18 = sbr.rel (0) target = $region13
    $region12: #{tpu_custom_call.1} parent=1 // pred_region
      _
    $region13: #{tpu_custom_call.1} parent=1 // pred_fallthru
      _
    // Predicated region
    $region14: #{tpu_custom_call.1} parent=1 // pred_check
      _
    $region15: #{tpu_custom_call.1} parent=1 // pred_check_branch
      %20 = sbr.rel (0) target = $region17
    $region16: #{tpu_custom_call.1} parent=1 // pred_region
      _
    $region17: #{tpu_custom_call.1} parent=1 // pred_fallthru
      _
    // Predicated region
    $region18: #{tpu_custom_call.1} parent=1 // pred_check
      _
    $region19: #{tpu_custom_call.1} parent=1 // pred_check_branch
      %22 = sbr.rel (0) target = $region21
    $region20: #{tpu_custom_call.1} parent=1 // pred_region
      _
    $region21: #{tpu_custom_call.1} parent=1 // pred_fallthru
      _
    // Predicated region
    $region22: #{tpu_custom_call.1} parent=1 // pred_check
      _
    $region23: #{tpu_custom_call.1} parent=1 // pred_check_branch
      %24 = sbr.rel (0) target = $region25
    $region24: #{tpu_custom_call.1} parent=1 // pred_region
      %s26 = ssub.s32 256, 256
      %27 = vsyncadd [#allocation4], %s26
      %s28 = sshll.u32 [#allocation3], 4
      %s29 = int_to_ptr.vmem [resolvable:$true] %s28
      %34 = dma.hbm_to_vmem [thread:$0]  %s5, 256, %s29, [#allocation4], 128, 128, 8
    $region25: #{tpu_custom_call.1} parent=1 // pred_fallthru
      _
    // Predicated region
    $region26: #{tpu_custom_call.1} parent=1 // pred_check
      _
    $region27: #{tpu_custom_call.1} parent=1 // pred_check_branch
      %36 = sbr.rel (0) target = $region29
    $region28: #{tpu_custom_call.1} parent=1 // pred_region
      %37 = dma.done [#allocation4], 256
    $region29: #{tpu_custom_call.1} parent=1 // pred_fallthru
      _
    %p38 = scmp.eq.s32.totalorder 0, 0
    // Predicated region
    $region30: #{tpu_custom_call.1} parent=1 // pred_check
      %p39 = pneg %p38
    $region31: #{tpu_custom_call.1} parent=1 // pred_check_branch
      %41 = sbr.rel (%p39) target = $region33
    $region32: #{tpu_custom_call.1} parent=1 // pred_region
      %v42 = vld [vmem:[%s0] sm:$0xff]
      %v43 = vld [vmem:[%s0 + $0x8] sm:$0xff]
      %v44 = vld [vmem:[%s1] sm:$0xff]
      %v45 = vld [vmem:[%s1 + $0x8] sm:$0xff]
      %v46 = vld [vmem:[%s1 + $0x10] sm:$0xff]
      %v47 = vld [vmem:[%s1 + $0x18] sm:$0xff]
      %v48 = vld [vmem:[%s2] sm:$0x1]
      %v50 = vlaneseq
      %v51 = vshrl.u32 %v50, 7
      %v52 = vsub.s32 0, %v51
      %v53 = vrot.slane %v48, %v52
      %vm55 = vcmask 261120
      %v57 = vsel %vm55, %v42, 0
      %v60 = vsel %vm55, %v43, 0
      %62 = vmatprep.subr.mxu0 0.0
      %63 = vmatpush1.msra.mxu0 0.0
      %64 = vmatprep.subr.mxu0 0.0
      %65 = vmatpush1.msra.mxu0 0.0
      %66 = vmatprep.subr.mxu0 0.0
      %67 = vmatpush1.msra.mxu0 0.0
      %68 = vmatprep.subr.mxu0 0.0
      %69 = vmatpush1.msra.mxu0 0.0
      %70 = vmatprep.subr.mxu0 0.0
      %71 = vmatpush1.msra.mxu0 0.0
      %72 = vmatprep.subr.mxu0 0.0
      %73 = vmatpush1.msra.mxu0 0.0
      %74 = vmatprep.subr.mxu0 0.0
      %75 = vmatpush1.msra.mxu0 0.0
      %76 = vmatprep.subr.mxu0 0.0
      %77 = vmatpush1.msra.mxu0 0.0
      %78 = vmatprep.subr.mxu0 0.0
      %79 = vmatpush1.msra.mxu0 0.0
      %80 = vmatprep.subr.mxu0 0.0
      %81 = vmatpush1.msra.mxu0 0.0
      %82 = vmatprep.subr.mxu0 0.0
      %83 = vmatpush1.msra.mxu0 0.0
      %84 = vmatprep.subr.mxu0 0.0
      %85 = vmatpush1.msra.mxu0 0.0
      %86 = vmatprep.subr.mxu0 0.0
      %87 = vmatpush1.msra.mxu0 %v47
      %88 = vmatprep.subr.mxu0 0.0
      %89 = vmatpush1.msra.mxu0 %v46
      %90 = vmatprep.subr.mxu0 0.0
      %91 = vmatpush1.msra.mxu0 %v45
      %92 = vmatprep.subr.mxu0 0.0
      %93 = vmatpush1.msra.mxu0 %v44
      %94 = vmatprep.subr.mxu0 0.0
      %95 = vmatpush2.msra.mxu0 0.0
      %96 = vmatprep.subr.mxu0 0.0
      %97 = vmatpush2.msra.mxu0 0.0
      %98 = vmatprep.subr.mxu0 0.0
      %99 = vmatpush2.msra.mxu0 0.0
      %100 = vmatprep.subr.mxu0 0.0
      %101 = vmatpush2.msra.mxu0 0.0
      %102 = vmatprep.subr.mxu0 0.0
      %103 = vmatpush2.msra.mxu0 0.0
      %104 = vmatprep.subr.mxu0 0.0
      %105 = vmatpush2.msra.mxu0 0.0
      %106 = vmatprep.subr.mxu0 0.0
      %107 = vmatpush2.msra.mxu0 0.0
      %108 = vmatprep.subr.mxu0 0.0
      %109 = vmatpush2.msra.mxu0 0.0
      %110 = vmatprep.subr.mxu0 0.0
      %111 = vmatpush2.msra.mxu0 0.0
      %112 = vmatprep.subr.mxu0 0.0
      %113 = vmatpush2.msra.mxu0 0.0
      %114 = vmatprep.subr.mxu0 0.0
      %115 = vmatpush2.msra.mxu0 0.0
      %116 = vmatprep.subr.mxu0 0.0
      %117 = vmatpush2.msra.mxu0 0.0
      %118 = vmatprep.subr.mxu0 0.0
      %119 = vmatpush2.msra.mxu0 0.0
      %120 = vmatprep.subr.mxu0 0.0
      %121 = vmatpush2.msra.mxu0 0.0
      %122 = vmatprep.subr.mxu0 0.0
      %123 = vmatpush2.msra.mxu0 0.0
      %124 = vmatprep.subr.mxu0 0.0
      %125 = vmatpush2.msra.mxu0 0.0
      %126 = vmatprep.mubr.f32.mxu0 0.0
      %127 = vmatmul.mubr.f32.gmra.mxu0 %v57
      %v128 = vpop.f32.mrf.mxu0
      %v129 = vadd.f32 %v53, %v128
      %v130 = vpop.f32.mrf.mxu0
      %131 = vmatprep.mubr.f32.mxu0 0.0
      %132 = vmatmul.mubr.f32.gmra.mxu0 %v60
      %v133 = vpop.f32.mrf.mxu0
      %v134 = vadd.f32 %v53, %v133
      %v135 = vpop.f32.mrf.mxu0
      %136 = vdwg.mxu0
      %v137 = vmul.f32 %v129, 0.5
      %v138 = vmul.f32 %v134, 0.5
      %v139 = vmul.f32 %v129, 0.70710677
      %v140 = vmul.f32 %v134, 0.70710677
      %v141 = verf.f32.pop %v139
      %v142 = verf.f32.pop %v140
      %v143 = vadd.f32 %v141, 1.0
      %v144 = vadd.f32 %v142, 1.0
      %v145 = vmul.f32 %v137, %v143
      %v146 = vmul.f32 %v138, %v144
      %v147 = vld [vmem:[%s3] sm:$0xff]
      %v148 = vld [vmem:[%s3 + $0x8] sm:$0xff]
      %v149 = vld [vmem:[%s3 + $0x10] sm:$0xff]
      %v150 = vld [vmem:[%s3 + $0x18] sm:$0xff]
      %v151 = vld [vmem:[%s4] sm:$0x1]
      %v153 = vlaneseq
      %v154 = vshrl.u32 %v153, 7
      %v155 = vsub.s32 0, %v154
      %v156 = vrot.slane %v151, %v155
      %v159 = vsel %vm55, %v145, 0
      %v162 = vsel %vm55, %v146, 0
      %164 = vmatprep.subr.mxu0 0.0
      %165 = vmatpush1.msra.mxu0 0.0
      %166 = vmatprep.subr.mxu0 0.0
      %167 = vmatpush1.msra.mxu0 0.0
      %168 = vmatprep.subr.mxu0 0.0
      %169 = vmatpush1.msra.mxu0 0.0
      %170 = vmatprep.subr.mxu0 0.0
      %171 = vmatpush1.msra.mxu0 0.0
      %172 = vmatprep.subr.mxu0 0.0
      %173 = vmatpush1.msra.mxu0 0.0
      %174 = vmatprep.subr.mxu0 0.0
      %175 = vmatpush1.msra.mxu0 0.0
      %176 = vmatprep.subr.mxu0 0.0
      %177 = vmatpush1.msra.mxu0 0.0
      %178 = vmatprep.subr.mxu0 0.0
      %179 = vmatpush1.msra.mxu0 0.0
      %180 = vmatprep.subr.mxu0 0.0
      %181 = vmatpush1.msra.mxu0 0.0
      %182 = vmatprep.subr.mxu0 0.0
      %183 = vmatpush1.msra.mxu0 0.0
      %184 = vmatprep.subr.mxu0 0.0
      %185 = vmatpush1.msra.mxu0 0.0
      %186 = vmatprep.subr.mxu0 0.0
      %187 = vmatpush1.msra.mxu0 0.0
      %188 = vmatprep.subr.mxu0 0.0
      %189 = vmatpush1.msra.mxu0 %v150
      %190 = vmatprep.subr.mxu0 0.0
      %191 = vmatpush1.msra.mxu0 %v149
      %192 = vmatprep.subr.mxu0 0.0
      %193 = vmatpush1.msra.mxu0 %v148
      %194 = vmatprep.subr.mxu0 0.0
      %195 = vmatpush1.msra.mxu0 %v147
      %196 = vmatprep.subr.mxu0 0.0
      %197 = vmatpush2.msra.mxu0 0.0
      %198 = vmatprep.subr.mxu0 0.0
      %199 = vmatpush2.msra.mxu0 0.0
      %200 = vmatprep.subr.mxu0 0.0
      %201 = vmatpush2.msra.mxu0 0.0
      %202 = vmatprep.subr.mxu0 0.0
      %203 = vmatpush2.msra.mxu0 0.0
      %204 = vmatprep.subr.mxu0 0.0
      %205 = vmatpush2.msra.mxu0 0.0
      %206 = vmatprep.subr.mxu0 0.0
      %207 = vmatpush2.msra.mxu0 0.0
      %208 = vmatprep.subr.mxu0 0.0
      %209 = vmatpush2.msra.mxu0 0.0
      %210 = vmatprep.subr.mxu0 0.0
      %211 = vmatpush2.msra.mxu0 0.0
      %212 = vmatprep.subr.mxu0 0.0
      %213 = vmatpush2.msra.mxu0 0.0
      %214 = vmatprep.subr.mxu0 0.0
      %215 = vmatpush2.msra.mxu0 0.0
      %216 = vmatprep.subr.mxu0 0.0
      %217 = vmatpush2.msra.mxu0 0.0
      %218 = vmatprep.subr.mxu0 0.0
      %219 = vmatpush2.msra.mxu0 0.0
      %220 = vmatprep.subr.mxu0 0.0
      %221 = vmatpush2.msra.mxu0 0.0
      %222 = vmatprep.subr.mxu0 0.0
      %223 = vmatpush2.msra.mxu0 0.0
      %224 = vmatprep.subr.mxu0 0.0
      %225 = vmatpush2.msra.mxu0 0.0
      %226 = vmatprep.subr.mxu0 0.0
      %227 = vmatpush2.msra.mxu0 0.0
      %228 = vmatprep.mubr.f32.mxu0 0.0
      %229 = vmatmul.mubr.f32.gmra.mxu0 %v159
      %v230 = vpop.f32.mrf.mxu0
      %v231 = vadd.f32 %v156, %v230
      %v232 = vpop.f32.mrf.mxu0
      %233 = vmatprep.mubr.f32.mxu0 0.0
      %234 = vmatmul.mubr.f32.gmra.mxu0 %v162
      %v235 = vpop.f32.mrf.mxu0
      %v236 = vadd.f32 %v156, %v235
      %v237 = vpop.f32.mrf.mxu0
      %238 = vdwg.mxu0
      %vm239 = vcmask 130048
      %240 = vst.msk [vmem:[#allocation2] sm:$0xff] %vm239, %v231
      %241 = vst.msk [vmem:[#allocation2 + $0x8] sm:$0xff] %vm239, %v236
    $region33: #{tpu_custom_call.1} parent=1 // pred_fallthru
      _
    %v242 = vld [vmem:[#allocation2] sm:$0xff]
    %v243 = vld [vmem:[#allocation2 + $0x8] sm:$0xff]
    %v244 = vld [vmem:[#allocation3] sm:$0xff]
    %v245 = vld [vmem:[#allocation3 + $0x8] sm:$0xff]
    %vm246 = vcmask 130048
    %v248 = vsel %vm246, %v242, 0
    %v251 = vsel %vm246, %v243, 0
    %253 = vmatprep.subr.mxu0 0.0
    %254 = vmatpush1.msra.mxu0 0.0
    %255 = vmatprep.subr.mxu0 0.0
    %256 = vmatpush1.msra.mxu0 0.0
    %257 = vmatprep.subr.mxu0 0.0
    %258 = vmatpush1.msra.mxu0 0.0
    %259 = vmatprep.subr.mxu0 0.0
    %260 = vmatpush1.msra.mxu0 0.0
    %261 = vmatprep.subr.mxu0 0.0
    %262 = vmatpush1.msra.mxu0 0.0
    %263 = vmatprep.subr.mxu0 0.0
    %264 = vmatpush1.msra.mxu0 0.0
    %265 = vmatprep.subr.mxu0 0.0
    %266 = vmatpush1.msra.mxu0 0.0
    %267 = vmatprep.subr.mxu0 0.0
    %268 = vmatpush1.msra.mxu0 0.0
    %269 = vmatprep.subr.mxu0 0.0
    %270 = vmatpush1.msra.mxu0 0.0
    %271 = vmatprep.subr.mxu0 0.0
    %272 = vmatpush1.msra.mxu0 0.0
    %273 = vmatprep.subr.mxu0 0.0
    %274 = vmatpush1.msra.mxu0 0.0
    %275 = vmatprep.subr.mxu0 0.0
    %276 = vmatpush1.msra.mxu0 0.0
    %277 = vmatprep.subr.mxu0 0.0
    %278 = vmatpush1.msra.mxu0 0.0
    %279 = vmatprep.subr.mxu0 0.0
    %280 = vmatpush1.msra.mxu0 0.0
    %281 = vmatprep.subr.mxu0 0.0
    %282 = vmatpush1.msra.mxu0 %v245
    %283 = vmatprep.subr.mxu0 0.0
    %284 = vmatpush1.msra.mxu0 %v244
    %285 = vmatprep.subr.mxu0 0.0
    %286 = vmatpush2.msra.mxu0 0.0
    %287 = vmatprep.subr.mxu0 0.0
    %288 = vmatpush2.msra.mxu0 0.0
    %289 = vmatprep.subr.mxu0 0.0
    %290 = vmatpush2.msra.mxu0 0.0
    %291 = vmatprep.subr.mxu0 0.0
    %292 = vmatpush2.msra.mxu0 0.0
    %293 = vmatprep.subr.mxu0 0.0
    %294 = vmatpush2.msra.mxu0 0.0
    %295 = vmatprep.subr.mxu0 0.0
    %296 = vmatpush2.msra.mxu0 0.0
    %297 = vmatprep.subr.mxu0 0.0
    %298 = vmatpush2.msra.mxu0 0.0
    %299 = vmatprep.subr.mxu0 0.0
    %300 = vmatpush2.msra.mxu0 0.0
    %301 = vmatprep.subr.mxu0 0.0
    %302 = vmatpush2.msra.mxu0 0.0
    %303 = vmatprep.subr.mxu0 0.0
    %304 = vmatpush2.msra.mxu0 0.0
    %305 = vmatprep.subr.mxu0 0.0
    %306 = vmatpush2.msra.mxu0 0.0
    %307 = vmatprep.subr.mxu0 0.0
    %308 = vmatpush2.msra.mxu0 0.0
    %309 = vmatprep.subr.mxu0 0.0
    %310 = vmatpush2.msra.mxu0 0.0
    %311 = vmatprep.subr.mxu0 0.0
    %312 = vmatpush2.msra.mxu0 0.0
    %313 = vmatprep.subr.mxu0 0.0
    %314 = vmatpush2.msra.mxu0 0.0
    %315 = vmatprep.subr.mxu0 0.0
    %316 = vmatpush2.msra.mxu0 0.0
    %317 = vmatprep.mubr.f32.mxu0 0.0
    %318 = vmatmul.mubr.f32.gmra.mxu0 %v248
    %v319 = vpop.f32.mrf.mxu0
    %v320 = vadd.f32 0.0, %v319
    %v321 = vpop.f32.mrf.mxu0
    %322 = vmatprep.mubr.f32.mxu0 0.0
    %323 = vmatmul.mubr.f32.gmra.mxu0 %v251
    %v324 = vpop.f32.mrf.mxu0
    %v325 = vadd.f32 0.0, %v324
    %v326 = vpop.f32.mrf.mxu0
    %327 = vdwg.mxu0
    %328 = vst [vmem:[#allocation6] sm:$0xff] %v320
    %329 = vst [vmem:[#allocation6 + $0x8] sm:$0xff] %v325
    // Predicated region
    $region34: #{tpu_custom_call.1} parent=1 // pred_check
      _
    $region35: #{tpu_custom_call.1} parent=1 // pred_check_branch
      %331 = sbr.rel (0) target = $region37
    $region36: #{tpu_custom_call.1} parent=1 // pred_region
      %s333 = ssub.s32 256, 256
      %334 = vsyncadd [#allocation5], %s333
      %s335 = sshll.u32 [#allocation6], 4
      %s336 = int_to_ptr.vmem [resolvable:$true] %s335
      %341 = dma.vmem_to_hbm [thread:$0]  %s336, 256, %s6, [#allocation5], 128, 128, 8
    $region37: #{tpu_custom_call.1} parent=1 // pred_fallthru
      _
    // Predicated region
    $region38: #{tpu_custom_call.1} parent=1 // pred_check
      _
    $region39: #{tpu_custom_call.1} parent=1 // pred_check_branch
      %343 = sbr.rel (0) target = $region41
    $region40: #{tpu_custom_call.1} parent=1 // pred_region
      %344 = dma.done [#allocation5], 256
    $region41: #{tpu_custom_call.1} parent=1 // pred_fallthru
      _
    %345 = vsyncpa [#allocation4], 1
    %346 = vsyncpa [#allocation5], 1

</llo_original>
